<compile_context>
chip_gen: v7x
topology: tpu7x:2x2x1
jax: 0.10.0
libtpu: 0.0.40
codegen_flags: <defaults>
</compile_context>

<pallas_src>
import math

import jax
import jax.numpy as jnp
import numpy as np
from jax.experimental import pallas as pl
from jax.experimental.pallas import tpu as pltpu


# -----------------------------------------------------------------------------
# __init__ equivalent: build freqs_cos / freqs_sin buffers (deterministic glue).
# -----------------------------------------------------------------------------
def make_vision_rope_freqs(dim, pt_seq_len, ft_seq_len=None, custom_freqs=None,
                           freqs_for="lang", theta=10000.0, max_freq=10.0,
                           num_freqs=1):
    if custom_freqs is not None:
        freqs = jnp.asarray(custom_freqs, jnp.float32)
    elif freqs_for == "lang":
        freqs = 1.0 / (theta ** (jnp.arange(0, dim, 2)[: dim // 2].astype(jnp.float32) / dim))
    elif freqs_for == "pixel":
        freqs = jnp.linspace(1.0, max_freq / 2, dim // 2, dtype=jnp.float32) * math.pi
    elif freqs_for == "constant":
        freqs = jnp.ones((num_freqs,), jnp.float32)
    else:
        raise ValueError(freqs_for)

    if ft_seq_len is None:
        ft_seq_len = pt_seq_len
    t = jnp.arange(ft_seq_len, dtype=jnp.float32) / ft_seq_len * pt_seq_len

    freqs_h = t[:, None] * freqs[None, :]                      # (ft, dim//2)
    freqs_h = jnp.repeat(freqs_h, 2, axis=-1)                  # (ft, dim)  [f0,f0,f1,f1,...]
    freqs_w = freqs_h                                          # same construction

    ft = ft_seq_len
    fh = jnp.broadcast_to(freqs_h[:, None, :], (ft, ft, freqs_h.shape[-1]))
    fw = jnp.broadcast_to(freqs_w[None, :, :], (ft, ft, freqs_w.shape[-1]))
    freqs2d = jnp.concatenate([fh, fw], axis=-1)               # (ft, ft, 2*dim)
    return jnp.cos(freqs2d), jnp.sin(freqs2d)


# -----------------------------------------------------------------------------
# Wrapper-side buffer prep (done ONCE, cached): pad trig to the full feature
# width and fold the rotate_half parity + sign into a single signed-sin buffer.
#   even lane d: out += x[d+1] * (-sin[d])
#   odd  lane d: out += x[d-1] * (+sin[d])
# -----------------------------------------------------------------------------
def _build_full_width_trig(freqs_cos, freqs_sin, start_index, feat_dim, trig_dtype):
    H, W, rot_dim = freqs_cos.shape
    N = H * W
    end_index = start_index + rot_dim

    cos2d = freqs_cos.reshape(N, rot_dim).astype(jnp.float32)
    sin2d = freqs_sin.reshape(N, rot_dim).astype(jnp.float32)

    cos_full = jnp.ones((N, feat_dim), jnp.float32).at[:, start_index:end_index].set(cos2d)
    sin_full = jnp.zeros((N, feat_dim), jnp.float32).at[:, start_index:end_index].set(sin2d)

    lane = jnp.arange(feat_dim)
    sign = jnp.where((lane % 2) == 0, -1.0, 1.0)               # -sin on even, +sin on odd
    sin_signed = sin_full * sign[None, :]
    return cos_full.astype(trig_dtype), sin_signed.astype(trig_dtype)


# -----------------------------------------------------------------------------
# Generation-aware VMEM budget + tile sizing.
# -----------------------------------------------------------------------------
def _vmem_limit_bytes():
    cap = None
    try:
        cap = int(pltpu.get_tpu_info().vmem_capacity_bytes)
    except Exception:
        try:
            kind = jax.devices()[0].device_kind.lower()
            cap = 64 * 1024 * 1024 if ("v7" in kind or "7x" in kind) else 128 * 1024 * 1024
        except Exception:
            cap = 64 * 1024 * 1024
    # 64 MiB scoped limit on 128 MiB parts (v5e/v6e), 32 MiB on v7x (64 MiB VMEM).
    return min(64 * 1024 * 1024, max(16 * 1024 * 1024, cap // 2))


def _choose_tile_n(N, feat_dim, x_dtype, trig_dtype, batch, vmem_limit_bytes):
    """Rows per spatial tile, sized from the full double-buffered working set."""
    x_b = jnp.dtype(x_dtype).itemsize
    t_b = jnp.dtype(trig_dtype).itemsize
    sublane = 16 if x_b < 4 else 8

    # Per grid step, VMEM holds (double-buffered): x + out (x dtype) and
    # cos + sin_signed (trig dtype).  Keep ~30% headroom inside the scoped limit.
    per_row_bytes = 2 * feat_dim * (2 * x_b + 2 * t_b)
    budget = int(vmem_limit_bytes * 0.7)
    rows = max(sublane, budget // max(per_row_bytes, 1))

    # Megacore: if the whole spatial extent fits in one tile and B == 1, split N
    # so there are at least 2 independent grid steps (v7x has 2 TensorCores).
    if batch == 1 and rows >= N and N > sublane:
        half = -(-((N + 1) // 2) // sublane) * sublane
        rows = min(rows, half)

    if rows >= N:
        return N                                   # full-extent block (always legal)

    rows = max(sublane, (rows // sublane) * sublane)
    # Prefer a TN that divides N (no ragged / masked last block).
    for tn in range(rows, sublane - 1, -sublane):
        if N % tn == 0:
            return tn
    return rows


# -----------------------------------------------------------------------------
# Pallas kernel:
#   out = x * cos + where(even_lane, roll(x, D-1), roll(x, 1)) * sin_signed
# Rolls run on the XLU over the native-dtype x (packed bf16 -> half the vregs);
# arithmetic is done in f32; one lane-dense full-width store.
# -----------------------------------------------------------------------------
def _rope_kernel(x_ref, cos_ref, sin_ref, o_ref):
    x_nat = x_ref[...]                                  # (TN, D), native dtype
    d = x_nat.shape[-1]
    # Non-negative shifts only:
    #   roll(x, d-1)[i] == x[(i+1) % d]   -> partner for even lanes
    #   roll(x, 1)[i]   == x[i-1]         -> partner for odd lanes
    x_next = pltpu.roll(x_nat, shift=d - 1, axis=1)
    x_prev = pltpu.roll(x_nat, shift=1, axis=1)

    lane = jax.lax.broadcasted_iota(jnp.int32, x_nat.shape, dimension=1)
    swapped = jnp.where((lane & 1) == 0, x_next, x_prev).astype(jnp.float32)

    out = (x_nat.astype(jnp.float32) * cos_ref[...].astype(jnp.float32)
           + swapped * sin_ref[...].astype(jnp.float32))
    o_ref[...] = out.astype(o_ref.dtype)


def _apply_rope_pallas(x2d, cos_full, sin_signed, tn, vmem_limit_bytes):
    B, N, D = x2d.shape
    grid = (pl.cdiv(N, tn), B)   # N-tile OUTER: trig blocks constant across the batch axis
    return pl.pallas_call(
        _rope_kernel,
        out_shape=jax.ShapeDtypeStruct((B, N, D), x2d.dtype),
        grid_spec=pl.GridSpec(
            grid=grid,
            in_specs=[
                pl.BlockSpec((pl.Squeezed(), tn, D), lambda j, b: (b, j, 0)),  # x
                pl.BlockSpec((tn, D), lambda j, b: (j, 0)),                    # cos (full width)
                pl.BlockSpec((tn, D), lambda j, b: (j, 0)),                    # signed sin
            ],
            out_specs=pl.BlockSpec((pl.Squeezed(), tn, D), lambda j, b: (b, j, 0)),
        ),
        compiler_params=pltpu.CompilerParams(
            dimension_semantics=("parallel", "parallel"),
            vmem_limit_bytes=vmem_limit_bytes,
        ),
    )(x2d, cos_full, sin_signed)


# -----------------------------------------------------------------------------
# Module-like wrapper: builds freq buffers once, caches full-width trig per
# (start_index, feat_dim, dtype) — the analogue of PyTorch's registered buffers.
# -----------------------------------------------------------------------------
class VisionRotaryEmbedding:
    def __init__(self, dim, pt_seq_len, ft_seq_len=None, custom_freqs=None,
                 freqs_for="lang", theta=10000.0, max_freq=10.0, num_freqs=1):
        self.freqs_cos, self.freqs_sin = make_vision_rope_freqs(
            dim, pt_seq_len, ft_seq_len, custom_freqs, freqs_for, theta,
            max_freq, num_freqs)
        self._trig_cache = {}

    def _get_trig(self, start_index, feat_dim, trig_dtype):
        key = (int(start_index), int(feat_dim), jnp.dtype(trig_dtype).name)
        if key not in self._trig_cache:
            cos_full, sin_signed = _build_full_width_trig(
                self.freqs_cos, self.freqs_sin, start_index, feat_dim, trig_dtype)
            self._trig_cache[key] = (jax.block_until_ready(cos_full),
                                     jax.block_until_ready(sin_signed))
        return self._trig_cache[key]

    def __call__(self, x, start_index=0, trig_dtype=None):
        """x: (B, H, W, D). Mirrors the PyTorch forward."""
        B, H, W, D = x.shape
        rot_dim = self.freqs_cos.shape[-1]
        assert rot_dim <= D, "feature dimension is not of sufficient size to rotate"
        assert self.freqs_cos.shape[:2] == (H, W)
        # Lane-parity trick requires the rotary pairs to stay aligned with lane parity.
        assert start_index % 2 == 0, "start_index must be even"
        assert rot_dim % 2 == 0, "rot_dim must be even"
        assert start_index + rot_dim <= D

        N = H * W
        x2d = x.reshape(B, N, D)

        if trig_dtype is None:
            # f32 trig for f32 inputs (exact); narrow trig for bf16/fp16 inputs
            # to halve their HBM traffic (kernel upcasts to f32 either way).
            trig_dtype = jnp.float32 if jnp.dtype(x.dtype).itemsize >= 4 else x.dtype
        cos_full, sin_signed = self._get_trig(start_index, D, trig_dtype)

        vmem_limit = _vmem_limit_bytes()
        tn = _choose_tile_n(N, D, x.dtype, trig_dtype, B, vmem_limit)

        out2d = _apply_rope_pallas(x2d, cos_full, sin_signed, tn, vmem_limit)
        return out2d.reshape(B, H, W, D)


# -----------------------------------------------------------------------------
# Pure-JAX reference (mirrors the PyTorch forward exactly) for validation.
# -----------------------------------------------------------------------------
def _rotate_half_ref(x):
    shp = x.shape
    x = x.reshape(shp[:-1] + (shp[-1] // 2, 2))
    x1, x2 = x[..., 0], x[..., 1]
    return jnp.stack([-x2, x1], axis=-1).reshape(shp)


def vision_rotary_embedding_ref(x, freqs_cos, freqs_sin, start_index=0):
    rot_dim = freqs_cos.shape[-1]
    end_index = start_index + rot_dim
    t_left = x[..., :start_index]
    t = x[..., start_index:end_index]
    t_right = x[..., end_index:]
    t = t * freqs_cos + _rotate_half_ref(t) * freqs_sin
    return jnp.concatenate([t_left, t, t_right], axis=-1)


if __name__ == "__main__":
    # Module config: dim=16 (half-dim per axis) -> rot_dim = 2*dim = 32
    dim = 16
    pt_seq_len = 8
    ft_seq_len = 8
    rope = VisionRotaryEmbedding(dim, pt_seq_len, ft_seq_len)

    # Input: (B, H, W, D); D=128 keeps the last dim lane-dense; start_index=8
    # exercises the left/rotary/right split of the original forward.
    B, H, W, D = 2, ft_seq_len, ft_seq_len, 128
    start_index = 8
    key = jax.random.PRNGKey(0)
    x = jax.random.normal(key, (B, H, W, D), dtype=jnp.float32)

    out = rope(x, start_index=start_index)
    out = jax.block_until_ready(out)

    ref = vision_rotary_embedding_ref(x, rope.freqs_cos, rope.freqs_sin,
                                      start_index=start_index)
    np.testing.assert_allclose(np.asarray(out), np.asarray(ref), rtol=1e-5, atol=1e-5)

    print("KERNEL_OK")
</pallas_src>

<mosaic_0001>
module attributes {stable_mosaic.version = 11 : i64} {
  func.func @_rope_kernel(%arg0: i32, %arg1: i32, %arg2: memref<1x64x128xf32, #tpu.memory_space<vmem>>, %arg3: memref<64x128xf32, #tpu.memory_space<vmem>>, %arg4: memref<64x128xf32, #tpu.memory_space<vmem>>, %arg5: memref<1x64x128xf32, #tpu.memory_space<vmem>>) attributes {dimension_semantics = [#tpu.dimension_semantics<parallel>, #tpu.dimension_semantics<parallel>], iteration_bounds = array<i64: 1, 2>, scalar_prefetch = 0 : i64, scratch_operands = 0 : i64, tpu.core_type = #tpu.core_type<tc>, window_params = [{transform_indices = @transform_0, window_bounds = array<i64: 1, 64, 128>}, {transform_indices = @transform_1, window_bounds = array<i64: 64, 128>}, {transform_indices = @transform_2, window_bounds = array<i64: 64, 128>}, {transform_indices = @transform_3, window_bounds = array<i64: 1, 64, 128>}]} {
    %c0 = arith.constant 0 : index
    %c0_0 = arith.constant 0 : index
    %c0_1 = arith.constant 0 : index
    %0 = vector.load %arg2[%c0, %c0_0, %c0_1] : memref<1x64x128xf32, #tpu.memory_space<vmem>>, vector<1x64x128xf32>
    %1 = vector.shape_cast %0 : vector<1x64x128xf32> to vector<64x128xf32>
    %c127_i32 = arith.constant 127 : i32
    %2 = tpu.dynamic_rotate %1 by %c127_i32 dim 1 : vector<64x128xf32>, i32 -> vector<64x128xf32>
    %c1_i32 = arith.constant 1 : i32
    %3 = tpu.dynamic_rotate %1 by %c1_i32 dim 1 : vector<64x128xf32>, i32 -> vector<64x128xf32>
    %4 = tpu.iota {dimensions = array<i32: 1>} : vector<64x128xi32>
    %c1_i32_2 = arith.constant 1 : i32
    %5 = vector.broadcast %c1_i32_2 : i32 to vector<64x128xi32>
    %6 = arith.andi %4, %5 : vector<64x128xi32>
    %c0_i32 = arith.constant 0 : i32
    %7 = vector.broadcast %c0_i32 : i32 to vector<64x128xi32>
    %8 = arith.cmpi eq, %6, %7 : vector<64x128xi32>
    %9 = arith.select %8, %2, %3 : vector<64x128xi1>, vector<64x128xf32>
    %c0_3 = arith.constant 0 : index
    %c0_4 = arith.constant 0 : index
    %10 = vector.load %arg3[%c0_3, %c0_4] : memref<64x128xf32, #tpu.memory_space<vmem>>, vector<64x128xf32>
    %11 = arith.mulf %1, %10 : vector<64x128xf32>
    %c0_5 = arith.constant 0 : index
    %c0_6 = arith.constant 0 : index
    %12 = vector.load %arg4[%c0_5, %c0_6] : memref<64x128xf32, #tpu.memory_space<vmem>>, vector<64x128xf32>
    %13 = arith.mulf %9, %12 : vector<64x128xf32>
    %14 = arith.addf %11, %13 : vector<64x128xf32>
    %c0_7 = arith.constant 0 : index
    %c0_8 = arith.constant 0 : index
    %c0_9 = arith.constant 0 : index
    %15 = vector.load %arg5[%c0_7, %c0_8, %c0_9] : memref<1x64x128xf32, #tpu.memory_space<vmem>>, vector<1x64x128xf32>
    %16 = vector.shape_cast %15 : vector<1x64x128xf32> to vector<64x128xf32>
    %17 = vector.shape_cast %14 : vector<64x128xf32> to vector<1x64x128xf32>
    tpu.vector_store %arg5[%c0_7, %c0_8, %c0_9], %17 {strides = array<i32>} : memref<1x64x128xf32, #tpu.memory_space<vmem>>, vector<1x64x128xf32>,
    return
  }
  func.func @transform_0(%arg0: i32, %arg1: i32) -> (i32, i32, i32) {
    %c0_i32 = arith.constant 0 : i32
    %c0_i32_0 = arith.constant 0 : i32
    return %arg1, %arg0, %c0_i32 : i32, i32, i32
  }
  func.func @transform_1(%arg0: i32, %arg1: i32) -> (i32, i32) {
    %c0_i32 = arith.constant 0 : i32
    %c0_i32_0 = arith.constant 0 : i32
    return %arg0, %c0_i32 : i32, i32
  }
  func.func @transform_2(%arg0: i32, %arg1: i32) -> (i32, i32) {
    %c0_i32 = arith.constant 0 : i32
    %c0_i32_0 = arith.constant 0 : i32
    return %arg0, %c0_i32 : i32, i32
  }
  func.func @transform_3(%arg0: i32, %arg1: i32) -> (i32, i32, i32) {
    %c0_i32 = arith.constant 0 : i32
    %c0_i32_0 = arith.constant 0 : i32
    return %arg1, %arg0, %c0_i32 : i32, i32, i32
  }
}

</mosaic_0001>

<llo_original>
// kernel: tpu_custom_call.1
$region0: #{tpu_custom_call.1}
  #allocation0 [shape = 'u32[]', space=smem, size = 0x4, offset = 0x4, fixed_abs, tag = 'smem constant byte address 0x4 - core index']
  #allocation1 [shape = 'u32[144,128]{1,0:T(1,128)}', space=vmem, size = 0x12000, scoped, tag = 'internal scratch']
  %s0 = inlined_call_operand.hbm [shape: f32[2,64,128], index: 0, kind: input, shape index: {}]
  %s1 = inlined_call_operand.hbm [shape: f32[64,128], index: 1, kind: input, shape index: {}]
  %s2 = inlined_call_operand.hbm [shape: f32[64,128], index: 2, kind: input, shape index: {}]
  %s3 = inlined_call_operand.hbm [shape: f32[2,64,128], index: 3, kind: output, shape index: {}]
  %s4 = sld [smem:[#allocation0]]
  $region57: #{tpu_custom_call.1} parent=0
    _
  %s6 = ssub.s32 1, %s4
  %s7 = scalar_select 0, %s6, %s4
  $region1: #{tpu_custom_call.1} parent=0
    #allocation2 [shape = 'u8[65536]{0}', space=vmem, size = 0x10000, scoped, tag = 'input window, operand 0']
    #allocation3 [shape = 's32[2]{0}', space=sflag, size = 0x8, scoped, tag = 'scoped memory for tpu_custom_call.1']
    #allocation4 [shape = 's32[2]{0}', space=sflag, size = 0x8, scoped, tag = 'scoped memory for tpu_custom_call.1']
    #allocation5 [shape = 'u8[32768]{0}', space=vmem, size = 0x8000, scoped, tag = 'input window, operand 1, single buffered']
    #allocation6 [shape = 's32[1]{0}', space=sflag, size = 0x4, scoped, tag = 'scoped memory for tpu_custom_call.1']
    #allocation7 [shape = 'u8[32768]{0}', space=vmem, size = 0x8000, scoped, tag = 'input window, operand 2, single buffered']
    #allocation8 [shape = 'u8[65536]{0}', space=vmem, size = 0x10000, scoped, tag = 'output window, operand 0']
    %8 = vsyncpa [#allocation3], 0
    %s9 = scalar_lea.sflag [#allocation3], 1
    %10 = vsyncpa %s9, 0
    %11 = vsyncpa [#allocation6], 0
    %12 = vsyncpa [#allocation4], 0
    %s13 = scalar_lea.sflag [#allocation4], 1
    %14 = vsyncpa %s13, 0
    loop: start=0, step=1, limit=4
    $region2: #{tpu_custom_call.1} parent=1 // loop_pre_header
      _
    $region3: #{tpu_custom_call.1} parent=1 // loop_header
      %s16 = sphi 0, %s20
      %p17 = scmp.ge.s32.totalorder %s16, 4
      %s23 = sphi 0, %s35
      %s24 = sphi 0, %s31
      %s25 = sphi 0, %s23
      %s26 = sphi 0, %s24
      %s27 = sphi 0, %s25
      %s28 = sphi 0, %s26
      %s40 = sphi 0, %s42
      %s43 = sphi 0, %s40
      %s44 = sphi 0, %s43
      %s60 = sphi 0, %s44
      %s66 = sphi 0, %s68
      %s69 = sphi 0, %s66
      %s70 = sphi 0, %s69
      %s86 = sphi 0, %s70
      %s92 = sphi 0, %s94
      %s95 = sphi 0, %s92
      %s96 = sphi 0, %s95
      %s112 = sphi 0, %s96
      %s120 = sphi 0, %s122
      %s123 = sphi 0, %s120
      %s124 = sphi 0, %s123
      %s140 = sphi 0, %s124
    $region4: #{tpu_custom_call.1} parent=1 // loop_header_branch
      %19 = sbr.rel (%p17) target = $region8
    $region5: #{tpu_custom_call.1} parent=1 // loop_body
      %s21 = ssub.s32 %s16, 1
      %s22 = ssub.s32 %s16, 2
      %s29 = sadd.s32 1, %s24
      %p30 = scmp.ge.s32.totalorder %s29, 2
      %s31 = scalar_select %p30, 0, %s29
      %s32 = sadd.s32 1, %s23
      %s33 = scalar_select %p30, %s32, %s23
      %p34 = scmp.ge.s32.totalorder %s33, 1
      %s35 = scalar_select %p34, 0, %s33
      %s36 = ssub.s32 %s24, %s31
      %s37 = ssub.s32 %s23, %s35
      %s38 = sor.u32 %s36, %s37
      %p39 = scmp.eq.s32.totalorder %s38, 0
      %s41 = sadd.s32 %s40, 1
      %s42 = scalar_select %p39, %s40, %s41
      %p45 = pneg %p39
      %p46 = scmp.eq.s32.totalorder %s16, 1
      %p47 = por %p45, %p46
      %p48 = scmp.ne.s32.totalorder %s40, %s43
      %p49 = scmp.eq.s32.totalorder %s16, 0
      %p50 = por %p48, %p49
      %p51 = scmp.ne.s32.totalorder %s40, %s43
      %p52 = scmp.eq.s32.totalorder %s21, 1
      %p53 = por %p51, %p52
      %p54 = scmp.ne.s32.totalorder %s43, %s44
      %p55 = scmp.eq.s32.totalorder %s21, 0
      %p56 = por %p54, %p55
      %p57 = scmp.ne.s32.totalorder %s43, %s44
      %p58 = scmp.eq.s32.totalorder %s22, 1
      %p59 = por %p57, %p58
      %p61 = scmp.ne.s32.totalorder %s44, %s60
      %p62 = scmp.eq.s32.totalorder %s22, 0
      %p63 = por %p61, %p62
      %s64 = ssub.s32 %s23, %s35
      %p65 = scmp.eq.s32.totalorder %s64, 0
      %s67 = sadd.s32 %s66, 1
      %s68 = scalar_select %p65, %s66, %s67
      %p71 = pneg %p65
      %p72 = scmp.eq.s32.totalorder %s16, 1
      %p73 = por %p71, %p72
      %p74 = scmp.ne.s32.totalorder %s66, %s69
      %p75 = scmp.eq.s32.totalorder %s16, 0
      %p76 = por %p74, %p75
      %p77 = scmp.ne.s32.totalorder %s66, %s69
      %p78 = scmp.eq.s32.totalorder %s21, 1
      %p79 = por %p77, %p78
      %p80 = scmp.ne.s32.totalorder %s69, %s70
      %p81 = scmp.eq.s32.totalorder %s21, 0
      %p82 = por %p80, %p81
      %p83 = scmp.ne.s32.totalorder %s69, %s70
      %p84 = scmp.eq.s32.totalorder %s22, 1
      %p85 = por %p83, %p84
      %p87 = scmp.ne.s32.totalorder %s70, %s86
      %p88 = scmp.eq.s32.totalorder %s22, 0
      %p89 = por %p87, %p88
      %s90 = ssub.s32 %s23, %s35
      %p91 = scmp.eq.s32.totalorder %s90, 0
      %s93 = sadd.s32 %s92, 1
      %s94 = scalar_select %p91, %s92, %s93
      %p97 = pneg %p91
      %p98 = scmp.eq.s32.totalorder %s16, 1
      %p99 = por %p97, %p98
      %p100 = scmp.ne.s32.totalorder %s92, %s95
      %p101 = scmp.eq.s32.totalorder %s16, 0
      %p102 = por %p100, %p101
      %p103 = scmp.ne.s32.totalorder %s92, %s95
      %p104 = scmp.eq.s32.totalorder %s21, 1
      %p105 = por %p103, %p104
      %p106 = scmp.ne.s32.totalorder %s95, %s96
      %p107 = scmp.eq.s32.totalorder %s21, 0
      %p108 = por %p106, %p107
      %p109 = scmp.ne.s32.totalorder %s95, %s96
      %p110 = scmp.eq.s32.totalorder %s22, 1
      %p111 = por %p109, %p110
      %p113 = scmp.ne.s32.totalorder %s96, %s112
      %p114 = scmp.eq.s32.totalorder %s22, 0
      %p115 = por %p113, %p114
      %s116 = ssub.s32 %s24, %s31
      %s117 = ssub.s32 %s23, %s35
      %s118 = sor.u32 %s116, %s117
      %p119 = scmp.eq.s32.totalorder %s118, 0
      %s121 = sadd.s32 %s120, 1
      %s122 = scalar_select %p119, %s120, %s121
      %p125 = pneg %p119
      %p126 = scmp.eq.s32.totalorder %s16, 1
      %p127 = por %p125, %p126
      %p128 = scmp.ne.s32.totalorder %s120, %s123
      %p129 = scmp.eq.s32.totalorder %s16, 0
      %p130 = por %p128, %p129
      %p131 = scmp.ne.s32.totalorder %s120, %s123
      %p132 = scmp.eq.s32.totalorder %s21, 1
      %p133 = por %p131, %p132
      %p134 = scmp.ne.s32.totalorder %s123, %s124
      %p135 = scmp.eq.s32.totalorder %s21, 0
      %p136 = por %p134, %p135
      %p137 = scmp.ne.s32.totalorder %s123, %s124
      %p138 = scmp.eq.s32.totalorder %s22, 1
      %p139 = por %p137, %p138
      %p141 = scmp.ne.s32.totalorder %s124, %s140
      %p142 = scmp.eq.s32.totalorder %s22, 0
      %p143 = por %p141, %p142
      %p144 = scmp.le.s32.totalorder 1, %s16
      %p145 = scmp.lt.s32.totalorder %s16, 3
      %p146 = pnand %p144, %p145
      %p147 = pneg %p146
      // Predicated region
      $region9: #{tpu_custom_call.1} parent=5 // pred_check
        _
      $region10: #{tpu_custom_call.1} parent=5 // pred_check_branch
        %149 = sbr.rel (%p146) target = $region12
      $region11: #{tpu_custom_call.1} parent=5 // pred_region
        %s150 = ssub.s32 %s16, 1
        // Predicated region
        $region13: #{tpu_custom_call.1} parent=11 // pred_check
          %p151 = pneg %p82
        $region14: #{tpu_custom_call.1} parent=11 // pred_check_branch
          %153 = sbr.rel (%p151) target = $region16
        $region15: #{tpu_custom_call.1} parent=11 // pred_region
          %s154 = smul.u32 8, %s25
          %s156 = ssub.s32 1024, 1024
          %157 = vsyncadd [#allocation6], %s156
          %s158 = smul.addr %s154, 128
          %s159 = scalar_lea.hbm %s1, %s158
          %s160 = sshll.u32 [#allocation5], 4
          %s161 = int_to_ptr.vmem [resolvable:$true] %s160
          %166 = dma.hbm_to_vmem [thread:$0]  %s159, 1024, %s161, [#allocation6], 128, 128, 8
        $region16: #{tpu_custom_call.1} parent=11 // pred_fallthru
          _
        // Predicated region
        $region17: #{tpu_custom_call.1} parent=11 // pred_check
          %p167 = pneg %p108
        $region18: #{tpu_custom_call.1} parent=11 // pred_check_branch
          %169 = sbr.rel (%p167) target = $region20
        $region19: #{tpu_custom_call.1} parent=11 // pred_region
          %s170 = smul.u32 8, %s25
          %s172 = ssub.s32 1024, 1024
          %173 = vsyncadd [#allocation6], %s172
          %s174 = smul.addr %s170, 128
          %s175 = scalar_lea.hbm %s2, %s174
          %s176 = sshll.u32 [#allocation7], 4
          %s177 = int_to_ptr.vmem [resolvable:$true] %s176
          %182 = dma.hbm_to_vmem [thread:$0]  %s175, 1024, %s177, [#allocation6], 128, 128, 8
        $region20: #{tpu_custom_call.1} parent=11 // pred_fallthru
          _
      $region12: #{tpu_custom_call.1} parent=5 // pred_fallthru
        _
      %p183 = scmp.lt.s32.totalorder %s16, 2
      // Predicated region
      $region21: #{tpu_custom_call.1} parent=5 // pred_check
        %p184 = pneg %p183
      $region22: #{tpu_custom_call.1} parent=5 // pred_check_branch
        %186 = sbr.rel (%p184) target = $region24
      $region23: #{tpu_custom_call.1} parent=5 // pred_region
        // Predicated region
        $region25: #{tpu_custom_call.1} parent=23 // pred_check
          %p187 = pneg %p50
        $region26: #{tpu_custom_call.1} parent=23 // pred_check_branch
          %189 = sbr.rel (%p187) target = $region28
        $region27: #{tpu_custom_call.1} parent=23 // pred_region
          %s190 = sand.u32 %s40, 1
          %s191 = scalar_lea.sflag [#allocation3], %s190
          %s192 = sand.u32 %s40, 1
          %s193 = smul.addr %s192, 64
          %s194 = scalar_lea.vmem [#allocation2], %s193
          %s195 = smul.u32 8, %s23
          %s197 = ssub.s32 1024, 1024
          %198 = vsyncadd %s191, %s197
          %s199 = smul.addr %s24, 8
          %s200 = sadd.s32 %s195, %s199
          %s201 = smul.addr %s200, 128
          %s202 = scalar_lea.hbm %s0, %s201
          %s203 = sshll.u32 %s194, 4
          %s204 = int_to_ptr.vmem [resolvable:$true] %s203
          %209 = dma.hbm_to_vmem [thread:$0]  %s202, 1024, %s204, %s191, 128, 128, 8
        $region28: #{tpu_custom_call.1} parent=23 // pred_fallthru
          _
      $region24: #{tpu_custom_call.1} parent=5 // pred_fallthru
        _
      %p210 = scmp.le.s32.totalorder 1, %s16
      %p211 = scmp.lt.s32.totalorder %s16, 3
      %p212 = pnand %p210, %p211
      %p213 = pneg %p212
      // Predicated region
      $region29: #{tpu_custom_call.1} parent=5 // pred_check
        _
      $region30: #{tpu_custom_call.1} parent=5 // pred_check_branch
        %215 = sbr.rel (%p212) target = $region32
      $region31: #{tpu_custom_call.1} parent=5 // pred_region
        %s216 = ssub.s32 %s16, 1
        %s217 = sand.u32 %s43, 1
        %s218 = scalar_lea.sflag [#allocation3], %s217
        %s219 = sand.u32 %s43, 1
        %s220 = smul.addr %s219, 64
        %s221 = scalar_lea.vmem [#allocation2], %s220
        // Predicated region
        $region33: #{tpu_custom_call.1} parent=31 // pred_check
          %p222 = pneg %p56
        $region34: #{tpu_custom_call.1} parent=31 // pred_check_branch
          %224 = sbr.rel (%p222) target = $region36
        $region35: #{tpu_custom_call.1} parent=31 // pred_region
          %225 = dma.done %s218, 1024
        $region36: #{tpu_custom_call.1} parent=31 // pred_fallthru
          _
        // Predicated region
        $region37: #{tpu_custom_call.1} parent=31 // pred_check
          %p226 = pneg %p82
        $region38: #{tpu_custom_call.1} parent=31 // pred_check_branch
          %228 = sbr.rel (%p226) target = $region40
        $region39: #{tpu_custom_call.1} parent=31 // pred_region
          %229 = dma.done [#allocation6], 1024
        $region40: #{tpu_custom_call.1} parent=31 // pred_fallthru
          _
        // Predicated region
        $region41: #{tpu_custom_call.1} parent=31 // pred_check
          %p230 = pneg %p108
        $region42: #{tpu_custom_call.1} parent=31 // pred_check_branch
          %232 = sbr.rel (%p230) target = $region44
        $region43: #{tpu_custom_call.1} parent=31 // pred_region
          %233 = dma.done [#allocation6], 1024
        $region44: #{tpu_custom_call.1} parent=31 // pred_fallthru
          _
        %s234 = sand.u32 %s43, 1
        %s235 = scalar_lea.sflag [#allocation3], %s234
        %s236 = sand.u32 %s43, 1
        %s237 = smul.addr %s236, 64
        %s238 = scalar_lea.vmem [#allocation2], %s237
        %p239 = pneg %p56
        %p240 = pneg %p53
        %p241 = pneg %p82
        %p242 = pneg %p79
        %p243 = pneg %p108
        %p244 = pneg %p105
        %p245 = pneg %p136
        %p246 = pneg %p133
        %s247 = sand.u32 %s123, 1
        %s248 = scalar_lea.sflag [#allocation4], %s247
        %s249 = sand.u32 %s123, 1
        %s250 = smul.addr %s249, 64
        %s251 = scalar_lea.vmem [#allocation8], %s250
        %s252 = smul.u32 8, %s25
        %s253 = smul.u32 8, %s25
        %s254 = smul.u32 8, %s25
        %s255 = smul.u32 8, %s25
        %v256 = vld [vmem:[%s221] sm:$0xff]
        %v257 = vld [vmem:[%s221 + $0x8] sm:$0xff]
        %v258 = vld [vmem:[%s221 + $0x10] sm:$0xff]
        %v259 = vld [vmem:[%s221 + $0x18] sm:$0xff]
        %v260 = vld [vmem:[%s221 + $0x20] sm:$0xff]
        %v261 = vld [vmem:[%s221 + $0x28] sm:$0xff]
        %v262 = vld [vmem:[%s221 + $0x30] sm:$0xff]
        %v263 = vld [vmem:[%s221 + $0x38] sm:$0xff]
        %264 = vrot.lane.b32.xlu0 %v256, 127
        %v265 = vpop.permute.xlu0 %264
        %266 = vrot.lane.b32.xlu0 %v257, 127
        %v267 = vpop.permute.xlu0 %266
        %268 = vrot.lane.b32.xlu0 %v258, 127
        %v269 = vpop.permute.xlu0 %268
        %270 = vrot.lane.b32.xlu0 %v259, 127
        %v271 = vpop.permute.xlu0 %270
        %272 = vrot.lane.b32.xlu0 %v260, 127
        %v273 = vpop.permute.xlu0 %272
        %274 = vrot.lane.b32.xlu0 %v261, 127
        %v275 = vpop.permute.xlu0 %274
        %276 = vrot.lane.b32.xlu0 %v262, 127
        %v277 = vpop.permute.xlu0 %276
        %278 = vrot.lane.b32.xlu0 %v263, 127
        %v279 = vpop.permute.xlu0 %278
        %280 = vrot.lane.b32.xlu0 %v256, 1
        %v281 = vpop.permute.xlu0 %280
        %282 = vrot.lane.b32.xlu0 %v257, 1
        %v283 = vpop.permute.xlu0 %282
        %284 = vrot.lane.b32.xlu0 %v258, 1
        %v285 = vpop.permute.xlu0 %284
        %286 = vrot.lane.b32.xlu0 %v259, 1
        %v287 = vpop.permute.xlu0 %286
        %288 = vrot.lane.b32.xlu0 %v260, 1
        %v289 = vpop.permute.xlu0 %288
        %290 = vrot.lane.b32.xlu0 %v261, 1
        %v291 = vpop.permute.xlu0 %290
        %292 = vrot.lane.b32.xlu0 %v262, 1
        %v293 = vpop.permute.xlu0 %292
        %294 = vrot.lane.b32.xlu0 %v263, 1
        %v295 = vpop.permute.xlu0 %294
        %v296 = vlaneseq
        %v297 = vand.u32 %v296, 127
        %v298 = vand.u32 %v297, 1
        %vm299 = vcmp.eq.s32.totalorder %v298, 0
        %v300 = vsel %vm299, %v265, %v281
        %v301 = vsel %vm299, %v267, %v283
        %v302 = vsel %vm299, %v269, %v285
        %v303 = vsel %vm299, %v271, %v287
        %v304 = vsel %vm299, %v273, %v289
        %v305 = vsel %vm299, %v275, %v291
        %v306 = vsel %vm299, %v277, %v293
        %v307 = vsel %vm299, %v279, %v295
        %v308 = vld [vmem:[#allocation5] sm:$0xff]
        %v309 = vld [vmem:[#allocation5 + $0x8] sm:$0xff]
        %v310 = vld [vmem:[#allocation5 + $0x10] sm:$0xff]
        %v311 = vld [vmem:[#allocation5 + $0x18] sm:$0xff]
        %v312 = vld [vmem:[#allocation5 + $0x20] sm:$0xff]
        %v313 = vld [vmem:[#allocation5 + $0x28] sm:$0xff]
        %v314 = vld [vmem:[#allocation5 + $0x30] sm:$0xff]
        %v315 = vld [vmem:[#allocation5 + $0x38] sm:$0xff]
        %v316 = vmul.f32 %v256, %v308
        %v317 = vmul.f32 %v257, %v309
        %v318 = vmul.f32 %v258, %v310
        %v319 = vmul.f32 %v259, %v311
        %v320 = vmul.f32 %v260, %v312
        %v321 = vmul.f32 %v261, %v313
        %v322 = vmul.f32 %v262, %v314
        %v323 = vmul.f32 %v263, %v315
        %v324 = vld [vmem:[#allocation7] sm:$0xff]
        %v325 = vld [vmem:[#allocation7 + $0x8] sm:$0xff]
        %v326 = vld [vmem:[#allocation7 + $0x10] sm:$0xff]
        %v327 = vld [vmem:[#allocation7 + $0x18] sm:$0xff]
        %v328 = vld [vmem:[#allocation7 + $0x20] sm:$0xff]
        %v329 = vld [vmem:[#allocation7 + $0x28] sm:$0xff]
        %v330 = vld [vmem:[#allocation7 + $0x30] sm:$0xff]
        %v331 = vld [vmem:[#allocation7 + $0x38] sm:$0xff]
        %v332 = vmul.f32 %v300, %v324
        %v333 = vmul.f32 %v301, %v325
        %v334 = vmul.f32 %v302, %v326
        %v335 = vmul.f32 %v303, %v327
        %v336 = vmul.f32 %v304, %v328
        %v337 = vmul.f32 %v305, %v329
        %v338 = vmul.f32 %v306, %v330
        %v339 = vmul.f32 %v307, %v331
        %v340 = vadd.f32 %v316, %v332
        %v341 = vadd.f32 %v317, %v333
        %v342 = vadd.f32 %v318, %v334
        %v343 = vadd.f32 %v319, %v335
        %v344 = vadd.f32 %v320, %v336
        %v345 = vadd.f32 %v321, %v337
        %v346 = vadd.f32 %v322, %v338
        %v347 = vadd.f32 %v323, %v339
        %348 = vst [vmem:[%s251] sm:$0xff] %v340
        %349 = vst [vmem:[%s251 + $0x8] sm:$0xff] %v341
        %350 = vst [vmem:[%s251 + $0x10] sm:$0xff] %v342
        %351 = vst [vmem:[%s251 + $0x18] sm:$0xff] %v343
        %352 = vst [vmem:[%s251 + $0x20] sm:$0xff] %v344
        %353 = vst [vmem:[%s251 + $0x28] sm:$0xff] %v345
        %354 = vst [vmem:[%s251 + $0x30] sm:$0xff] %v346
        %355 = vst [vmem:[%s251 + $0x38] sm:$0xff] %v347
        %s356 = sand.u32 %s123, 1
        %s357 = scalar_lea.sflag [#allocation4], %s356
        %s358 = sand.u32 %s123, 1
        %s359 = smul.addr %s358, 64
        %s360 = scalar_lea.vmem [#allocation8], %s359
        // Predicated region
        $region45: #{tpu_custom_call.1} parent=31 // pred_check
          %p361 = pneg %p133
        $region46: #{tpu_custom_call.1} parent=31 // pred_check_branch
          %363 = sbr.rel (%p361) target = $region48
        $region47: #{tpu_custom_call.1} parent=31 // pred_region
          %s364 = smul.u32 8, %s25
          %s366 = ssub.s32 1024, 1024
          %367 = vsyncadd %s357, %s366
          %s368 = smul.addr %s26, 8
          %s369 = sadd.s32 %s364, %s368
          %s370 = smul.addr %s369, 128
          %s371 = scalar_lea.hbm %s3, %s370
          %s372 = sshll.u32 %s360, 4
          %s373 = int_to_ptr.vmem [resolvable:$true] %s372
          %378 = dma.vmem_to_hbm [thread:$0]  %s373, 1024, %s371, %s357, 128, 128, 8
        $region48: #{tpu_custom_call.1} parent=31 // pred_fallthru
          _
      $region32: #{tpu_custom_call.1} parent=5 // pred_fallthru
        _
      %p379 = scmp.le.s32.totalorder 2, %s16
      // Predicated region
      $region49: #{tpu_custom_call.1} parent=5 // pred_check
        %p380 = pneg %p379
      $region50: #{tpu_custom_call.1} parent=5 // pred_check_branch
        %382 = sbr.rel (%p380) target = $region52
      $region51: #{tpu_custom_call.1} parent=5 // pred_region
        %s383 = ssub.s32 %s16, 2
        // Predicated region
        $region53: #{tpu_custom_call.1} parent=51 // pred_check
          %p384 = pneg %p139
        $region54: #{tpu_custom_call.1} parent=51 // pred_check_branch
          %386 = sbr.rel (%p384) target = $region56
        $region55: #{tpu_custom_call.1} parent=51 // pred_region
          %s387 = sand.u32 %s124, 1
          %s388 = scalar_lea.sflag [#allocation4], %s387
          %s389 = sand.u32 %s124, 1
          %s390 = smul.addr %s389, 64
          %s391 = scalar_lea.vmem [#allocation8], %s390
          %392 = dma.done %s388, 1024
        $region56: #{tpu_custom_call.1} parent=51 // pred_fallthru
          _
      $region52: #{tpu_custom_call.1} parent=5 // pred_fallthru
        _
    $region6: #{tpu_custom_call.1} parent=1 // loop_footer
      %s20 = sadd.s32 1, %s16
    $region7: #{tpu_custom_call.1} parent=1 // loop_footer_branch
      %15 = sbr.rel target = $region3
    $region8: #{tpu_custom_call.1} parent=1 // loop_exit
      _
    %393 = vsyncpa [#allocation3], 1
    %s394 = scalar_lea.sflag [#allocation3], 1
    %395 = vsyncpa %s394, 1
    %396 = vsyncpa [#allocation6], 1
    %397 = vsyncpa [#allocation4], 1
    %s398 = scalar_lea.sflag [#allocation4], 1
    %399 = vsyncpa %s398, 1

</llo_original>
